<compile_context>
chip_gen: v7x
topology: tpu7x:2x2x1
jax: 0.10.0
libtpu: 0.0.40
codegen_flags: <defaults>
</compile_context>

<pallas_src>
import functools

import jax
import jax.numpy as jnp
from jax.experimental import pallas as pl
from jax.experimental.pallas import tpu as pltpu


def _round_up(x, m):
    return ((x + m - 1) // m) * m


def _pad_axis(arr, axis, target):
    pad = target - arr.shape[axis]
    if pad == 0:
        return arr
    widths = [(0, 0)] * arr.ndim
    widths[axis] = (0, pad)
    return jnp.pad(arr, widths)


# ----------------------------------------------------------------------------
# Fused Pallas kernel: both GCN layers for one graph of the batch.
#   h1  = relu( agg1 + b1 )          agg1 = (A@X)@W1  or  A@(X@W1)
#   out =       A @ (h1 @ W2) + b2
# ----------------------------------------------------------------------------
def fused_gcn_kernel(a_ref, x_ref, w1_ref, b1_ref, w2_ref, b2_ref, o_ref,
                     *, reassoc_l1):
    # ---- layer 1 (f32 accumulation on the MXU) ----
    if reassoc_l1:
        ax = jnp.dot(a_ref[...], x_ref[...], preferred_element_type=jnp.float32)
        h = jnp.dot(ax.astype(jnp.bfloat16), w1_ref[...],
                    preferred_element_type=jnp.float32)
    else:
        xw = jnp.dot(x_ref[...], w1_ref[...], preferred_element_type=jnp.float32)
        h = jnp.dot(a_ref[...], xw.astype(jnp.bfloat16),
                    preferred_element_type=jnp.float32)
    # bias + ReLU in f32, then narrow to bf16 and feed layer 2 directly
    # (no VMEM scratch round-trip).
    h = jnp.maximum(h + b1_ref[...], 0.0).astype(jnp.bfloat16)

    # ---- layer 2 ----
    hw = jnp.dot(h, w2_ref[...], preferred_element_type=jnp.float32)
    out = jnp.dot(a_ref[...], hw.astype(jnp.bfloat16),
                  preferred_element_type=jnp.float32)
    o_ref[...] = (out + b2_ref[...]).astype(o_ref.dtype)


def _vmem_limit_bytes(n, in_dim, hid_p, out_p):
    """Budget for the resident blocks (double-buffered) + f32 intermediates."""
    bf16, f32 = 2, 4
    blocks = (n * n * bf16 + n * in_dim * bf16            # A, X   (per graph)
              + in_dim * hid_p * bf16 + hid_p * out_p * bf16   # W1, W2
              + hid_p * f32 + out_p * f32                 # b1, b2
              + n * out_p * f32)                          # output block
    interm = n * hid_p * f32 + n * max(in_dim, hid_p) * f32 + n * out_p * f32
    budget = int((2 * blocks + interm) * 1.25)            # 2x double-buffer, 25% slack
    return min(max(budget, 4 << 20), 100 << 20)           # floor 4 MiB, cap 100 MiB


def gcn_relation_predictor_batched(x_b, a_b, params):
    """Fused two-layer GCN over a batch of graphs.

    x_b: (B, N, input_dim) f32, a_b: (B, N, N) f32 normalized adjacency.
    Returns (B, N, output_dim) f32.
    """
    w1, b1, w2, b2 = params
    bsz, n, in_dim = x_b.shape
    hidden_dim = w1.shape[1]
    output_dim = w2.shape[1]

    # lane-dense padding of hidden / output feature dims (zero-pad, slice later)
    hid_p = _round_up(hidden_dim, 128)
    out_p = _round_up(output_dim, 128)
    w1_p = _pad_axis(w1, 1, hid_p)
    b1_p = _pad_axis(b1, 1, hid_p)
    w2_p = _pad_axis(_pad_axis(w2, 0, hid_p), 1, out_p)
    b2_p = _pad_axis(b2, 1, out_p)

    # bf16 operands, f32 accumulation inside the kernel
    a_bf = a_b.astype(jnp.bfloat16)
    x_bf = x_b.astype(jnp.bfloat16)
    w1_bf = w1_p.astype(jnp.bfloat16)
    w2_bf = w2_p.astype(jnp.bfloat16)

    # pick the cheaper ordering for the dominant N x N aggregation matmul,
    # comparing against the *padded* hidden width actually computed
    reassoc_l1 = in_dim < hid_p
    agg1_w = in_dim if reassoc_l1 else hid_p
    kernel = functools.partial(fused_gcn_kernel, reassoc_l1=reassoc_l1)

    flops = 2 * bsz * (n * n * agg1_w + n * in_dim * hid_p
                       + n * hid_p * out_p + n * n * out_p)
    bytes_accessed = (bsz * (n * n * 2 + n * in_dim * 2 + n * out_p * 4)
                      + in_dim * hid_p * 2 + hid_p * out_p * 2
                      + hid_p * 4 + out_p * 4)
    cost = pl.CostEstimate(flops=flops, transcendentals=0,
                           bytes_accessed=bytes_accessed)

    out_padded = pl.pallas_call(
        kernel,
        out_shape=jax.ShapeDtypeStruct((bsz, n, out_p), jnp.float32),
        grid=(bsz,),
        in_specs=[
            pl.BlockSpec((None, n, n), lambda b: (b, 0, 0)),        # A_hat[b]
            pl.BlockSpec((None, n, in_dim), lambda b: (b, 0, 0)),   # X[b]
            pl.BlockSpec((in_dim, hid_p), lambda b: (0, 0)),        # W1 (shared)
            pl.BlockSpec((1, hid_p), lambda b: (0, 0)),             # b1 (shared)
            pl.BlockSpec((hid_p, out_p), lambda b: (0, 0)),         # W2 (shared)
            pl.BlockSpec((1, out_p), lambda b: (0, 0)),             # b2 (shared)
        ],
        out_specs=pl.BlockSpec((None, n, out_p), lambda b: (b, 0, 0)),
        compiler_params=pltpu.CompilerParams(
            dimension_semantics=("parallel",),
            vmem_limit_bytes=_vmem_limit_bytes(n, in_dim, hid_p, out_p)),
        cost_estimate=cost,
    )(a_bf, x_bf, w1_bf, b1_p, w2_bf, b2_p)

    return out_padded[:, :, :output_dim]


def gcn_relation_predictor(x, a_hat, params):
    """Single-graph forward (module semantics). Returns (N, output_dim) f32."""
    out = gcn_relation_predictor_batched(x[None], a_hat[None], params)
    return out[0]


# ----------------------------------------------------------------------------
# Glue (plain JAX): dense normalized adjacency from edge_index, matching
# GCNConv's gcn_norm (add self-loops, symmetric D^-1/2 scaling).
# ----------------------------------------------------------------------------
def build_normalized_adjacency(edge_index, num_nodes):
    src = edge_index[0]
    dst = edge_index[1]
    loop = jnp.arange(num_nodes, dtype=src.dtype)
    src = jnp.concatenate([src, loop])
    dst = jnp.concatenate([dst, loop])
    a = jnp.zeros((num_nodes, num_nodes), jnp.float32).at[dst, src].add(1.0)
    deg = a.sum(axis=1)
    d_inv_sqrt = jnp.where(deg > 0.0, 1.0 / jnp.sqrt(deg), 0.0)
    return d_inv_sqrt[:, None] * a * d_inv_sqrt[None, :]


# ----------------------------------------------------------------------------
# Reference (pure JAX, f32) and deterministic parameter / input construction
# ----------------------------------------------------------------------------
def gcn_reference(x, a_hat, params):
    w1, b1, w2, b2 = params
    h = jnp.maximum(a_hat @ (x @ w1) + b1, 0.0)
    return a_hat @ (h @ w2) + b2


def glorot(key, shape):
    fan_in, fan_out = shape
    limit = jnp.sqrt(6.0 / (fan_in + fan_out))
    return jax.random.uniform(key, shape, jnp.float32, -limit, limit)


if __name__ == "__main__":
    batch = 4          # graphs per pallas_call (amortizes launch overhead)
    num_nodes = 16     # graph entities per graph
    input_dim = 32     # entity embedding dim (RotatE embedding width)
    hidden_dim = 128   # as in the original module
    output_dim = 8     # number of relation types
    num_edges = 48

    key = jax.random.PRNGKey(0)
    k_x, k_e1, k_e2, k_w1, k_w2 = jax.random.split(key, 5)

    # batched node features (entity embeddings)
    x_b = jax.random.normal(k_x, (batch, num_nodes, input_dim), jnp.float32)

    # deterministic synthetic edge_index [2, E] per graph; build dense A_hat
    heads = jax.random.randint(k_e1, (batch, num_edges), 0, num_nodes, jnp.int32)
    tails = jax.random.randint(k_e2, (batch, num_edges), 0, num_nodes, jnp.int32)
    a_b = jnp.stack([
        build_normalized_adjacency(jnp.stack([heads[g], tails[g]], axis=0),
                                   num_nodes)
        for g in range(batch)
    ], axis=0)

    # GCNConv params: Linear weight (glorot), bias zeros (PyG defaults)
    w1 = glorot(k_w1, (input_dim, hidden_dim))
    b1 = jnp.zeros((1, hidden_dim), jnp.float32)
    w2 = glorot(k_w2, (hidden_dim, output_dim))
    b2 = jnp.zeros((1, output_dim), jnp.float32)
    params = (w1, b1, w2, b2)

    # batched kernel run
    out_b = gcn_relation_predictor_batched(x_b, a_b, params)
    out_b = jax.block_until_ready(out_b)
    assert out_b.shape == (batch, num_nodes, output_dim)
    assert jnp.all(jnp.isfinite(out_b))

    # single-graph path (module semantics, B=1)
    out_single = gcn_relation_predictor(x_b[0], a_b[0], params)
    out_single = jax.block_until_ready(out_single)
    assert out_single.shape == (num_nodes, output_dim)

    # bf16 operands + f32 accumulation vs. pure-f32 reference: loose tolerance
    ref_b = jnp.stack([gcn_reference(x_b[g], a_b[g], params)
                       for g in range(batch)], axis=0)
    assert jnp.allclose(out_b, ref_b, rtol=6e-2, atol=6e-2), (
        float(jnp.max(jnp.abs(out_b - ref_b))))
    assert jnp.allclose(out_single, ref_b[0], rtol=6e-2, atol=6e-2), (
        float(jnp.max(jnp.abs(out_single - ref_b[0]))))

    print("KERNEL_OK")
</pallas_src>

<mosaic_0001>
module attributes {stable_mosaic.version = 11 : i64} {
  func.func @fused_gcn_kernel(%arg0: i32, %arg1: memref<1x16x16xbf16, #tpu.memory_space<vmem>>, %arg2: memref<1x16x32xbf16, #tpu.memory_space<vmem>>, %arg3: memref<32x128xbf16, #tpu.memory_space<vmem>>, %arg4: memref<1x128xf32, #tpu.memory_space<vmem>>, %arg5: memref<128x128xbf16, #tpu.memory_space<vmem>>, %arg6: memref<1x128xf32, #tpu.memory_space<vmem>>, %arg7: memref<1x16x128xf32, #tpu.memory_space<vmem>>) attributes {dimension_semantics = [#tpu.dimension_semantics<parallel>], iteration_bounds = array<i64: 4>, scalar_prefetch = 0 : i64, scratch_operands = 0 : i64, tpu.core_type = #tpu.core_type<tc>, window_params = [{transform_indices = @transform_0, window_bounds = array<i64: 1, 16, 16>}, {transform_indices = @transform_1, window_bounds = array<i64: 1, 16, 32>}, {pipeline_mode = #tpu.pipeline_mode<synchronous>, transform_indices = @transform_2, window_bounds = array<i64: 32, 128>}, {pipeline_mode = #tpu.pipeline_mode<synchronous>, transform_indices = @transform_3, window_bounds = array<i64: 1, 128>}, {pipeline_mode = #tpu.pipeline_mode<synchronous>, transform_indices = @transform_4, window_bounds = array<i64: 128, 128>}, {pipeline_mode = #tpu.pipeline_mode<synchronous>, transform_indices = @transform_5, window_bounds = array<i64: 1, 128>}, {transform_indices = @transform_6, window_bounds = array<i64: 1, 16, 128>}]} {
    %c0 = arith.constant 0 : index
    %c0_0 = arith.constant 0 : index
    %c0_1 = arith.constant 0 : index
    %0 = vector.load %arg1[%c0, %c0_0, %c0_1] : memref<1x16x16xbf16, #tpu.memory_space<vmem>>, vector<1x16x16xbf16>
    %1 = vector.shape_cast %0 : vector<1x16x16xbf16> to vector<16x16xbf16>
    %c0_2 = arith.constant 0 : index
    %c0_3 = arith.constant 0 : index
    %c0_4 = arith.constant 0 : index
    %2 = vector.load %arg2[%c0_2, %c0_3, %c0_4] : memref<1x16x32xbf16, #tpu.memory_space<vmem>>, vector<1x16x32xbf16>
    %3 = vector.shape_cast %2 : vector<1x16x32xbf16> to vector<16x32xbf16>
    %cst = arith.constant dense<0.000000e+00> : vector<16x32xf32>
    %4 = tpu.matmul %1, %3, %cst {dimension_numbers = #tpu.dot_dimension_numbers<[1], [0], [0], [1], [0, 0, 1, 1], [], []>} : vector<16x16xbf16>, vector<16x32xbf16>, vector<16x32xf32> -> vector<16x32xf32>
    %5 = arith.truncf %4 : vector<16x32xf32> to vector<16x32xbf16>
    %c0_5 = arith.constant 0 : index
    %c0_6 = arith.constant 0 : index
    %6 = vector.load %arg3[%c0_5, %c0_6] : memref<32x128xbf16, #tpu.memory_space<vmem>>, vector<32x128xbf16>
    %cst_7 = arith.constant dense<0.000000e+00> : vector<16x128xf32>
    %7 = tpu.matmul %5, %6, %cst_7 {dimension_numbers = #tpu.dot_dimension_numbers<[1], [0], [0], [1], [0, 0, 1, 1], [], []>} : vector<16x32xbf16>, vector<32x128xbf16>, vector<16x128xf32> -> vector<16x128xf32>
    %c0_8 = arith.constant 0 : index
    %c0_9 = arith.constant 0 : index
    %8 = vector.load %arg4[%c0_8, %c0_9] : memref<1x128xf32, #tpu.memory_space<vmem>>, vector<1x128xf32>
    %9 = vector.broadcast %8 : vector<1x128xf32> to vector<16x128xf32>
    %10 = arith.addf %7, %9 : vector<16x128xf32>
    %cst_10 = arith.constant 0.000000e+00 : f32
    %11 = vector.broadcast %cst_10 : f32 to vector<16x128xf32>
    %12 = arith.maximumf %10, %11 : vector<16x128xf32>
    %13 = arith.truncf %12 : vector<16x128xf32> to vector<16x128xbf16>
    %c0_11 = arith.constant 0 : index
    %c0_12 = arith.constant 0 : index
    %14 = vector.load %arg5[%c0_11, %c0_12] : memref<128x128xbf16, #tpu.memory_space<vmem>>, vector<128x128xbf16>
    %cst_13 = arith.constant dense<0.000000e+00> : vector<16x128xf32>
    %15 = tpu.matmul %13, %14, %cst_13 {dimension_numbers = #tpu.dot_dimension_numbers<[1], [0], [0], [1], [0, 0, 1, 1], [], []>} : vector<16x128xbf16>, vector<128x128xbf16>, vector<16x128xf32> -> vector<16x128xf32>
    %c0_14 = arith.constant 0 : index
    %c0_15 = arith.constant 0 : index
    %c0_16 = arith.constant 0 : index
    %16 = vector.load %arg1[%c0_14, %c0_15, %c0_16] : memref<1x16x16xbf16, #tpu.memory_space<vmem>>, vector<1x16x16xbf16>
    %17 = vector.shape_cast %16 : vector<1x16x16xbf16> to vector<16x16xbf16>
    %18 = arith.truncf %15 : vector<16x128xf32> to vector<16x128xbf16>
    %cst_17 = arith.constant dense<0.000000e+00> : vector<16x128xf32>
    %19 = tpu.matmul %17, %18, %cst_17 {dimension_numbers = #tpu.dot_dimension_numbers<[1], [0], [0], [1], [0, 0, 1, 1], [], []>} : vector<16x16xbf16>, vector<16x128xbf16>, vector<16x128xf32> -> vector<16x128xf32>
    %c0_18 = arith.constant 0 : index
    %c0_19 = arith.constant 0 : index
    %20 = vector.load %arg6[%c0_18, %c0_19] : memref<1x128xf32, #tpu.memory_space<vmem>>, vector<1x128xf32>
    %21 = vector.broadcast %20 : vector<1x128xf32> to vector<16x128xf32>
    %22 = arith.addf %19, %21 : vector<16x128xf32>
    %c0_20 = arith.constant 0 : index
    %c0_21 = arith.constant 0 : index
    %c0_22 = arith.constant 0 : index
    %23 = vector.load %arg7[%c0_20, %c0_21, %c0_22] : memref<1x16x128xf32, #tpu.memory_space<vmem>>, vector<1x16x128xf32>
    %24 = vector.shape_cast %23 : vector<1x16x128xf32> to vector<16x128xf32>
    %25 = vector.shape_cast %22 : vector<16x128xf32> to vector<1x16x128xf32>
    tpu.vector_store %arg7[%c0_20, %c0_21, %c0_22], %25 {strides = array<i32>} : memref<1x16x128xf32, #tpu.memory_space<vmem>>, vector<1x16x128xf32>,
    return
  }
  func.func @transform_0(%arg0: i32) -> (i32, i32, i32) {
    %c0_i32 = arith.constant 0 : i32
    %c0_i32_0 = arith.constant 0 : i32
    %c0_i32_1 = arith.constant 0 : i32
    return %arg0, %c0_i32, %c0_i32_0 : i32, i32, i32
  }
  func.func @transform_1(%arg0: i32) -> (i32, i32, i32) {
    %c0_i32 = arith.constant 0 : i32
    %c0_i32_0 = arith.constant 0 : i32
    %c0_i32_1 = arith.constant 0 : i32
    return %arg0, %c0_i32, %c0_i32_0 : i32, i32, i32
  }
  func.func @transform_2(%arg0: i32) -> (i32, i32) {
    %c0_i32 = arith.constant 0 : i32
    %c0_i32_0 = arith.constant 0 : i32
    %c0_i32_1 = arith.constant 0 : i32
    return %c0_i32, %c0_i32_0 : i32, i32
  }
  func.func @transform_3(%arg0: i32) -> (i32, i32) {
    %c0_i32 = arith.constant 0 : i32
    %c0_i32_0 = arith.constant 0 : i32
    %c0_i32_1 = arith.constant 0 : i32
    return %c0_i32, %c0_i32_0 : i32, i32
  }
  func.func @transform_4(%arg0: i32) -> (i32, i32) {
    %c0_i32 = arith.constant 0 : i32
    %c0_i32_0 = arith.constant 0 : i32
    %c0_i32_1 = arith.constant 0 : i32
    return %c0_i32, %c0_i32_0 : i32, i32
  }
  func.func @transform_5(%arg0: i32) -> (i32, i32) {
    %c0_i32 = arith.constant 0 : i32
    %c0_i32_0 = arith.constant 0 : i32
    %c0_i32_1 = arith.constant 0 : i32
    return %c0_i32, %c0_i32_0 : i32, i32
  }
  func.func @transform_6(%arg0: i32) -> (i32, i32, i32) {
    %c0_i32 = arith.constant 0 : i32
    %c0_i32_0 = arith.constant 0 : i32
    %c0_i32_1 = arith.constant 0 : i32
    return %arg0, %c0_i32, %c0_i32_0 : i32, i32, i32
  }
}

</mosaic_0001>

<llo_original>
// kernel: tpu_custom_call.1
$region0: #{tpu_custom_call.1}
  #allocation0 [shape = 'u32[]', space=smem, size = 0x4, offset = 0x4, fixed_abs, tag = 'smem constant byte address 0x4 - core index']
  #allocation1 [shape = 'u32[144,128]{1,0:T(1,128)}', space=vmem, size = 0x12000, scoped, tag = 'internal scratch']
  %s0 = inlined_call_operand.hbm [shape: bf16[4,16,16], index: 0, kind: input, shape index: {}]
  %s1 = inlined_call_operand.hbm [shape: bf16[4,16,32], index: 1, kind: input, shape index: {}]
  %s2 = inlined_call_operand.hbm [shape: bf16[32,128], index: 2, kind: input, shape index: {}]
  %s3 = inlined_call_operand.vmem [shape: f32[1,128], index: 3, kind: input, shape index: {}]
  %s4 = inlined_call_operand.hbm [shape: bf16[128,128], index: 4, kind: input, shape index: {}]
  %s5 = inlined_call_operand.vmem [shape: f32[1,128], index: 5, kind: input, shape index: {}]
  %s6 = inlined_call_operand.hbm [shape: f32[4,16,128], index: 6, kind: output, shape index: {}]
  %s7 = sld [smem:[#allocation0]]
  $region73: #{tpu_custom_call.1} parent=0
    _
  %s9 = ssub.s32 1, %s7
  %s10 = scalar_select 0, %s9, %s7
  $region1: #{tpu_custom_call.1} parent=0
    #allocation2 [shape = 'u8[8192]{0}', space=vmem, size = 0x2000, scoped, tag = 'input window, operand 0']
    #allocation3 [shape = 's32[2]{0}', space=sflag, size = 0x8, scoped, tag = 'scoped memory for tpu_custom_call.1']
    #allocation4 [shape = 's32[2]{0}', space=sflag, size = 0x8, scoped, tag = 'scoped memory for tpu_custom_call.1']
    #allocation5 [shape = 'u8[8192]{0}', space=vmem, size = 0x2000, scoped, tag = 'input window, operand 1']
    #allocation6 [shape = 's32[2]{0}', space=sflag, size = 0x8, scoped, tag = 'scoped memory for tpu_custom_call.1']
    #allocation7 [shape = 'u8[8192]{0}', space=vmem, size = 0x2000, scoped, tag = 'input window, operand 2, single buffered']
    #allocation8 [shape = 'u8[32768]{0}', space=vmem, size = 0x8000, scoped, tag = 'input window, operand 4, single buffered']
    #allocation9 [shape = 's32[1]{0}', space=sflag, size = 0x4, scoped, tag = 'scoped memory for tpu_custom_call.1']
    #allocation10 [shape = 'u8[16384]{0}', space=vmem, size = 0x4000, scoped, tag = 'output window, operand 0']
    %11 = vsyncpa [#allocation3], 0
    %s12 = scalar_lea.sflag [#allocation3], 1
    %13 = vsyncpa %s12, 0
    %14 = vsyncpa [#allocation6], 0
    %s15 = scalar_lea.sflag [#allocation6], 1
    %16 = vsyncpa %s15, 0
    %17 = vsyncpa [#allocation9], 0
    %18 = vsyncpa [#allocation4], 0
    %s19 = scalar_lea.sflag [#allocation4], 1
    %20 = vsyncpa %s19, 0
    loop: start=0, step=1, limit=6
    $region2: #{tpu_custom_call.1} parent=1 // loop_pre_header
      _
    $region3: #{tpu_custom_call.1} parent=1 // loop_header
      %s22 = sphi 0, %s26
      %p23 = scmp.ge.s32.totalorder %s22, 6
      %s32 = sphi 0, %s34
      %s35 = sphi 0, %s32
      %s36 = sphi 0, %s35
      %s52 = sphi 0, %s36
      %s58 = sphi 0, %s60
      %s61 = sphi 0, %s58
      %s62 = sphi 0, %s61
      %s78 = sphi 0, %s62
      %s82 = sphi 0, %s82
      %s84 = sphi 0, %s82
      %s85 = sphi 0, %s84
      %s99 = sphi 0, %s85
      %s103 = sphi 0, %s103
      %s105 = sphi 0, %s103
      %s106 = sphi 0, %s105
      %s120 = sphi 0, %s106
      %s124 = sphi 0, %s124
      %s126 = sphi 0, %s124
      %s127 = sphi 0, %s126
      %s141 = sphi 0, %s127
      %s145 = sphi 0, %s145
      %s147 = sphi 0, %s145
      %s148 = sphi 0, %s147
      %s162 = sphi 0, %s148
      %s168 = sphi 0, %s170
      %s171 = sphi 0, %s168
      %s172 = sphi 0, %s171
      %s188 = sphi 0, %s172
    $region4: #{tpu_custom_call.1} parent=1 // loop_header_branch
      %25 = sbr.rel (%p23) target = $region8
    $region5: #{tpu_custom_call.1} parent=1 // loop_body
      %s27 = ssub.s32 %s22, 1
      %s28 = ssub.s32 %s22, 2
      %s29 = sadd.s32 %s22, 1
      %s30 = ssub.s32 %s22, %s29
      %p31 = scmp.eq.s32.totalorder %s30, 0
      %s33 = sadd.s32 %s32, 1
      %s34 = scalar_select %p31, %s32, %s33
      %p37 = pneg %p31
      %p38 = scmp.eq.s32.totalorder %s22, 3
      %p39 = por %p37, %p38
      %p40 = scmp.ne.s32.totalorder %s32, %s35
      %p41 = scmp.eq.s32.totalorder %s22, 0
      %p42 = por %p40, %p41
      %p43 = scmp.ne.s32.totalorder %s32, %s35
      %p44 = scmp.eq.s32.totalorder %s27, 3
      %p45 = por %p43, %p44
      %p46 = scmp.ne.s32.totalorder %s35, %s36
      %p47 = scmp.eq.s32.totalorder %s27, 0
      %p48 = por %p46, %p47
      %p49 = scmp.ne.s32.totalorder %s35, %s36
      %p50 = scmp.eq.s32.totalorder %s28, 3
      %p51 = por %p49, %p50
      %p53 = scmp.ne.s32.totalorder %s36, %s52
      %p54 = scmp.eq.s32.totalorder %s28, 0
      %p55 = por %p53, %p54
      %s56 = ssub.s32 %s22, %s29
      %p57 = scmp.eq.s32.totalorder %s56, 0
      %s59 = sadd.s32 %s58, 1
      %s60 = scalar_select %p57, %s58, %s59
      %p63 = pneg %p57
      %p64 = scmp.eq.s32.totalorder %s22, 3
      %p65 = por %p63, %p64
      %p66 = scmp.ne.s32.totalorder %s58, %s61
      %p67 = scmp.eq.s32.totalorder %s22, 0
      %p68 = por %p66, %p67
      %p69 = scmp.ne.s32.totalorder %s58, %s61
      %p70 = scmp.eq.s32.totalorder %s27, 3
      %p71 = por %p69, %p70
      %p72 = scmp.ne.s32.totalorder %s61, %s62
      %p73 = scmp.eq.s32.totalorder %s27, 0
      %p74 = por %p72, %p73
      %p75 = scmp.ne.s32.totalorder %s61, %s62
      %p76 = scmp.eq.s32.totalorder %s28, 3
      %p77 = por %p75, %p76
      %p79 = scmp.ne.s32.totalorder %s62, %s78
      %p80 = scmp.eq.s32.totalorder %s28, 0
      %p81 = por %p79, %p80
      %s83 = sadd.s32 %s82, 1
      %p86 = scmp.eq.s32.totalorder %s22, 3
      %p87 = scmp.ne.s32.totalorder %s82, %s84
      %p88 = scmp.eq.s32.totalorder %s22, 0
      %p89 = por %p87, %p88
      %p90 = scmp.ne.s32.totalorder %s82, %s84
      %p91 = scmp.eq.s32.totalorder %s27, 3
      %p92 = por %p90, %p91
      %p93 = scmp.ne.s32.totalorder %s84, %s85
      %p94 = scmp.eq.s32.totalorder %s27, 0
      %p95 = por %p93, %p94
      %p96 = scmp.ne.s32.totalorder %s84, %s85
      %p97 = scmp.eq.s32.totalorder %s28, 3
      %p98 = por %p96, %p97
      %p100 = scmp.ne.s32.totalorder %s85, %s99
      %p101 = scmp.eq.s32.totalorder %s28, 0
      %p102 = por %p100, %p101
      %s104 = sadd.s32 %s103, 1
      %p107 = scmp.eq.s32.totalorder %s22, 3
      %p108 = scmp.ne.s32.totalorder %s103, %s105
      %p109 = scmp.eq.s32.totalorder %s22, 0
      %p110 = por %p108, %p109
      %p111 = scmp.ne.s32.totalorder %s103, %s105
      %p112 = scmp.eq.s32.totalorder %s27, 3
      %p113 = por %p111, %p112
      %p114 = scmp.ne.s32.totalorder %s105, %s106
      %p115 = scmp.eq.s32.totalorder %s27, 0
      %p116 = por %p114, %p115
      %p117 = scmp.ne.s32.totalorder %s105, %s106
      %p118 = scmp.eq.s32.totalorder %s28, 3
      %p119 = por %p117, %p118
      %p121 = scmp.ne.s32.totalorder %s106, %s120
      %p122 = scmp.eq.s32.totalorder %s28, 0
      %p123 = por %p121, %p122
      %s125 = sadd.s32 %s124, 1
      %p128 = scmp.eq.s32.totalorder %s22, 3
      %p129 = scmp.ne.s32.totalorder %s124, %s126
      %p130 = scmp.eq.s32.totalorder %s22, 0
      %p131 = por %p129, %p130
      %p132 = scmp.ne.s32.totalorder %s124, %s126
      %p133 = scmp.eq.s32.totalorder %s27, 3
      %p134 = por %p132, %p133
      %p135 = scmp.ne.s32.totalorder %s126, %s127
      %p136 = scmp.eq.s32.totalorder %s27, 0
      %p137 = por %p135, %p136
      %p138 = scmp.ne.s32.totalorder %s126, %s127
      %p139 = scmp.eq.s32.totalorder %s28, 3
      %p140 = por %p138, %p139
      %p142 = scmp.ne.s32.totalorder %s127, %s141
      %p143 = scmp.eq.s32.totalorder %s28, 0
      %p144 = por %p142, %p143
      %s146 = sadd.s32 %s145, 1
      %p149 = scmp.eq.s32.totalorder %s22, 3
      %p150 = scmp.ne.s32.totalorder %s145, %s147
      %p151 = scmp.eq.s32.totalorder %s22, 0
      %p152 = por %p150, %p151
      %p153 = scmp.ne.s32.totalorder %s145, %s147
      %p154 = scmp.eq.s32.totalorder %s27, 3
      %p155 = por %p153, %p154
      %p156 = scmp.ne.s32.totalorder %s147, %s148
      %p157 = scmp.eq.s32.totalorder %s27, 0
      %p158 = por %p156, %p157
      %p159 = scmp.ne.s32.totalorder %s147, %s148
      %p160 = scmp.eq.s32.totalorder %s28, 3
      %p161 = por %p159, %p160
      %p163 = scmp.ne.s32.totalorder %s148, %s162
      %p164 = scmp.eq.s32.totalorder %s28, 0
      %p165 = por %p163, %p164
      %s166 = ssub.s32 %s22, %s29
      %p167 = scmp.eq.s32.totalorder %s166, 0
      %s169 = sadd.s32 %s168, 1
      %s170 = scalar_select %p167, %s168, %s169
      %p173 = pneg %p167
      %p174 = scmp.eq.s32.totalorder %s22, 3
      %p175 = por %p173, %p174
      %p176 = scmp.ne.s32.totalorder %s168, %s171
      %p177 = scmp.eq.s32.totalorder %s22, 0
      %p178 = por %p176, %p177
      %p179 = scmp.ne.s32.totalorder %s168, %s171
      %p180 = scmp.eq.s32.totalorder %s27, 3
      %p181 = por %p179, %p180
      %p182 = scmp.ne.s32.totalorder %s171, %s172
      %p183 = scmp.eq.s32.totalorder %s27, 0
      %p184 = por %p182, %p183
      %p185 = scmp.ne.s32.totalorder %s171, %s172
      %p186 = scmp.eq.s32.totalorder %s28, 3
      %p187 = por %p185, %p186
      %p189 = scmp.ne.s32.totalorder %s172, %s188
      %p190 = scmp.eq.s32.totalorder %s28, 0
      %p191 = por %p189, %p190
      %p192 = scmp.le.s32.totalorder 1, %s22
      %p193 = scmp.lt.s32.totalorder %s22, 5
      %p194 = pnand %p192, %p193
      %p195 = pneg %p194
      // Predicated region
      $region9: #{tpu_custom_call.1} parent=5 // pred_check
        _
      $region10: #{tpu_custom_call.1} parent=5 // pred_check_branch
        %197 = sbr.rel (%p194) target = $region12
      $region11: #{tpu_custom_call.1} parent=5 // pred_region
        %s198 = ssub.s32 %s22, 1
        // Predicated region
        $region13: #{tpu_custom_call.1} parent=11 // pred_check
          %p199 = pneg %p95
        $region14: #{tpu_custom_call.1} parent=11 // pred_check_branch
          %201 = sbr.rel (%p199) target = $region16
        $region15: #{tpu_custom_call.1} parent=11 // pred_region
          %s203 = ssub.s32 256, 256
          %204 = vsyncadd [#allocation6], %s203
          %s205 = sshll.u32 [#allocation7], 4
          %s206 = int_to_ptr.vmem [resolvable:$true] %s205
          %211 = dma.hbm_to_vmem [thread:$0]  %s2, 256, %s206, [#allocation6], 64, 64, 4
        $region16: #{tpu_custom_call.1} parent=11 // pred_fallthru
          _
        // Predicated region
        $region17: #{tpu_custom_call.1} parent=11 // pred_check
          %p212 = pneg %p116
        $region18: #{tpu_custom_call.1} parent=11 // pred_check_branch
          %214 = sbr.rel (%p212) target = $region20
        $region19: #{tpu_custom_call.1} parent=11 // pred_region
          _
        $region20: #{tpu_custom_call.1} parent=11 // pred_fallthru
          _
        // Predicated region
        $region21: #{tpu_custom_call.1} parent=11 // pred_check
          %p215 = pneg %p137
        $region22: #{tpu_custom_call.1} parent=11 // pred_check_branch
          %217 = sbr.rel (%p215) target = $region24
        $region23: #{tpu_custom_call.1} parent=11 // pred_region
          %s219 = ssub.s32 1024, 1024
          %220 = vsyncadd [#allocation9], %s219
          %s221 = sshll.u32 [#allocation8], 4
          %s222 = int_to_ptr.vmem [resolvable:$true] %s221
          %227 = dma.hbm_to_vmem [thread:$0]  %s4, 1024, %s222, [#allocation9], 64, 64, 4
        $region24: #{tpu_custom_call.1} parent=11 // pred_fallthru
          _
        // Predicated region
        $region25: #{tpu_custom_call.1} parent=11 // pred_check
          %p228 = pneg %p158
        $region26: #{tpu_custom_call.1} parent=11 // pred_check_branch
          %230 = sbr.rel (%p228) target = $region28
        $region27: #{tpu_custom_call.1} parent=11 // pred_region
          _
        $region28: #{tpu_custom_call.1} parent=11 // pred_fallthru
          _
      $region12: #{tpu_custom_call.1} parent=5 // pred_fallthru
        _
      %p231 = scmp.lt.s32.totalorder %s22, 4
      // Predicated region
      $region29: #{tpu_custom_call.1} parent=5 // pred_check
        %p232 = pneg %p231
      $region30: #{tpu_custom_call.1} parent=5 // pred_check_branch
        %234 = sbr.rel (%p232) target = $region32
      $region31: #{tpu_custom_call.1} parent=5 // pred_region
        // Predicated region
        $region33: #{tpu_custom_call.1} parent=31 // pred_check
          %p235 = pneg %p42
        $region34: #{tpu_custom_call.1} parent=31 // pred_check_branch
          %237 = sbr.rel (%p235) target = $region36
        $region35: #{tpu_custom_call.1} parent=31 // pred_region
          %s238 = sand.u32 %s32, 1
          %s239 = scalar_lea.sflag [#allocation3], %s238
          %s240 = sand.u32 %s32, 1
          %s241 = smul.addr %s240, 8
          %s242 = scalar_lea.vmem [#allocation2], %s241
          %s244 = ssub.s32 128, 128
          %245 = vsyncadd %s239, %s244
          %s246 = smul.addr %s22, 2
          %s247 = smul.addr %s246, 64
          %s248 = scalar_lea.hbm %s0, %s247
          %s249 = sshll.u32 %s242, 4
          %s250 = int_to_ptr.vmem [resolvable:$true] %s249
          %255 = dma.hbm_to_vmem [thread:$0]  %s248, 128, %s250, %s239, 64, 64, 4
        $region36: #{tpu_custom_call.1} parent=31 // pred_fallthru
          _
        // Predicated region
        $region37: #{tpu_custom_call.1} parent=31 // pred_check
          %p256 = pneg %p68
        $region38: #{tpu_custom_call.1} parent=31 // pred_check_branch
          %258 = sbr.rel (%p256) target = $region40
        $region39: #{tpu_custom_call.1} parent=31 // pred_region
          %s259 = sand.u32 %s22, 1
          %s260 = scalar_lea.sflag [#allocation6], %s259
          %s261 = sand.u32 %s58, 1
          %s262 = smul.addr %s261, 8
          %s263 = scalar_lea.vmem [#allocation5], %s262
          %s265 = ssub.s32 128, 128
          %266 = vsyncadd %s260, %s265
          %s267 = smul.addr %s22, 2
          %s268 = smul.addr %s267, 64
          %s269 = scalar_lea.hbm %s1, %s268
          %s270 = sshll.u32 %s263, 4
          %s271 = int_to_ptr.vmem [resolvable:$true] %s270
          %276 = dma.hbm_to_vmem [thread:$0]  %s269, 128, %s271, %s260, 64, 64, 4
        $region40: #{tpu_custom_call.1} parent=31 // pred_fallthru
          _
      $region32: #{tpu_custom_call.1} parent=5 // pred_fallthru
        _
      %p277 = scmp.le.s32.totalorder 1, %s22
      %p278 = scmp.lt.s32.totalorder %s22, 5
      %p279 = pnand %p277, %p278
      %p280 = pneg %p279
      // Predicated region
      $region41: #{tpu_custom_call.1} parent=5 // pred_check
        _
      $region42: #{tpu_custom_call.1} parent=5 // pred_check_branch
        %282 = sbr.rel (%p279) target = $region44
      $region43: #{tpu_custom_call.1} parent=5 // pred_region
        %s283 = ssub.s32 %s22, 1
        %s284 = sand.u32 %s35, 1
        %s285 = scalar_lea.sflag [#allocation3], %s284
        %s286 = sand.u32 %s35, 1
        %s287 = smul.addr %s286, 8
        %s288 = scalar_lea.vmem [#allocation2], %s287
        // Predicated region
        $region45: #{tpu_custom_call.1} parent=43 // pred_check
          %p289 = pneg %p48
        $region46: #{tpu_custom_call.1} parent=43 // pred_check_branch
          %291 = sbr.rel (%p289) target = $region48
        $region47: #{tpu_custom_call.1} parent=43 // pred_region
          %292 = dma.done %s285, 128
        $region48: #{tpu_custom_call.1} parent=43 // pred_fallthru
          _
        %s293 = sand.u32 %s27, 1
        %s294 = scalar_lea.sflag [#allocation6], %s293
        %s295 = sand.u32 %s61, 1
        %s296 = smul.addr %s295, 8
        %s297 = scalar_lea.vmem [#allocation5], %s296
        // Predicated region
        $region49: #{tpu_custom_call.1} parent=43 // pred_check
          %p298 = pneg %p74
        $region50: #{tpu_custom_call.1} parent=43 // pred_check_branch
          %300 = sbr.rel (%p298) target = $region52
        $region51: #{tpu_custom_call.1} parent=43 // pred_region
          %301 = dma.done %s294, 128
        $region52: #{tpu_custom_call.1} parent=43 // pred_fallthru
          _
        // Predicated region
        $region53: #{tpu_custom_call.1} parent=43 // pred_check
          %p302 = pneg %p95
        $region54: #{tpu_custom_call.1} parent=43 // pred_check_branch
          %304 = sbr.rel (%p302) target = $region56
        $region55: #{tpu_custom_call.1} parent=43 // pred_region
          %305 = dma.done [#allocation6], 256
        $region56: #{tpu_custom_call.1} parent=43 // pred_fallthru
          _
        // Predicated region
        $region57: #{tpu_custom_call.1} parent=43 // pred_check
          %p306 = pneg %p137
        $region58: #{tpu_custom_call.1} parent=43 // pred_check_branch
          %308 = sbr.rel (%p306) target = $region60
        $region59: #{tpu_custom_call.1} parent=43 // pred_region
          %309 = dma.done [#allocation9], 1024
        $region60: #{tpu_custom_call.1} parent=43 // pred_fallthru
          _
        %s310 = sand.u32 %s35, 1
        %s311 = scalar_lea.sflag [#allocation3], %s310
        %s312 = sand.u32 %s35, 1
        %s313 = smul.addr %s312, 8
        %s314 = scalar_lea.vmem [#allocation2], %s313
        %p315 = pneg %p48
        %p316 = pneg %p45
        %s317 = sand.u32 %s27, 1
        %s318 = scalar_lea.sflag [#allocation6], %s317
        %s319 = sand.u32 %s61, 1
        %s320 = smul.addr %s319, 8
        %s321 = scalar_lea.vmem [#allocation5], %s320
        %p322 = pneg %p74
        %p323 = pneg %p71
        %p324 = pneg %p95
        %p325 = pneg %p92
        %p326 = pneg %p116
        %p327 = pneg %p113
        %p328 = pneg %p137
        %p329 = pneg %p134
        %p330 = pneg %p158
        %p331 = pneg %p155
        %p332 = pneg %p184
        %p333 = pneg %p181
        %s334 = sand.u32 %s171, 1
        %s335 = scalar_lea.sflag [#allocation4], %s334
        %s336 = sand.u32 %s171, 1
        %s337 = smul.addr %s336, 16
        %s338 = scalar_lea.vmem [#allocation10], %s337
        %v340 = vld [vmem:[%s288] sm:$0xf]
        %v341 = vld [vmem:[%s288 + $0x4] sm:$0xf]
        %v342 = vld [vmem:[%s297] sm:$0xf]
        %v343 = vld [vmem:[%s297 + $0x4] sm:$0xf]
        %v346 = vunpack.c.l.b16 %v340
        %v347 = vunpack.c.l.b16 %v341
        %v348 = vpack.c.b16 %v347, %v346
        %v351 = vunpack.c.l.b16 %v342
        %v352 = vunpack.c.l.b16 %v343
        %v353 = vpack.c.b16 %v352, %v351
        %vm355 = vcmask 130048
        %v357 = vsel %vm355, %v348, 0
        %359 = vmatprep.subr.bf16.mxu0 0
        %360 = vmatpush1.bf16.msra.mxu0 %v353
        %361 = vmatprep.subr.bf16.mxu0 0
        %362 = vmatpush1.bf16.msra.mxu0 0
        %363 = vmatprep.subr.bf16.mxu0 0
        %364 = vmatpush1.bf16.msra.mxu0 0
        %365 = vmatprep.subr.bf16.mxu0 0
        %366 = vmatpush1.bf16.msra.mxu0 0
        %367 = vmatprep.subr.bf16.mxu0 0
        %368 = vmatpush1.bf16.msra.mxu0 0
        %369 = vmatprep.subr.bf16.mxu0 0
        %370 = vmatpush1.bf16.msra.mxu0 0
        %371 = vmatprep.subr.bf16.mxu0 0
        %372 = vmatpush1.bf16.msra.mxu0 0
        %373 = vmatprep.subr.bf16.mxu0 0
        %374 = vmatpush1.bf16.msra.mxu0 0
        %375 = vmatprep.subr.bf16.mxu0 0
        %376 = vmatpush1.bf16.msra.mxu0 0
        %377 = vmatprep.subr.bf16.mxu0 0
        %378 = vmatpush1.bf16.msra.mxu0 0
        %379 = vmatprep.subr.bf16.mxu0 0
        %380 = vmatpush1.bf16.msra.mxu0 0
        %381 = vmatprep.subr.bf16.mxu0 0
        %382 = vmatpush1.bf16.msra.mxu0 0
        %383 = vmatprep.subr.bf16.mxu0 0
        %384 = vmatpush1.bf16.msra.mxu0 0
        %385 = vmatprep.subr.bf16.mxu0 0
        %386 = vmatpush1.bf16.msra.mxu0 0
        %387 = vmatprep.subr.bf16.mxu0 0
        %388 = vmatpush1.bf16.msra.mxu0 0
        %389 = vmatprep.subr.bf16.mxu0 0
        %390 = vmatpush1.bf16.msra.mxu0 0
        %391 = vmatprep.mubr.bf16.mxu0 0
        %392 = vmatmul.mubr.bf16.gmra.mrb[0].mxu0 %v357
        %v393 = vpop.f32.mrb[0].mxu0
        %v394 = vadd.f32 0.0, %v393
        %v395 = vpop.f32.mrb[0].mxu0
        %v396 = vpop.f32.mrb[0].mxu0
        %v397 = vadd.f32 0.0, %v396
        %v398 = vpop.f32.mrb[0].mxu0
        %399 = vdwg.mxu0
        %v400 = vpack.c.bf16 %v397, %v394
        %v401 = vld [vmem:[#allocation7] sm:$0xf]
        %v402 = vld [vmem:[#allocation7 + $0x4] sm:$0xf]
        %v403 = vld [vmem:[#allocation7 + $0x8] sm:$0xf]
        %v404 = vld [vmem:[#allocation7 + $0xc] sm:$0xf]
        %v405 = vld [vmem:[%s3] sm:$0x1]
        %v407 = vlaneseq
        %v408 = vshrl.u32 %v407, 7
        %v409 = vsub.s32 0, %v408
        %v410 = vrot.slane %v405, %v409
        %v416 = vunpack.c.l.b16 %v401
        %v417 = vunpack.c.l.b16 %v402
        %v418 = vunpack.c.l.b16 %v403
        %v419 = vunpack.c.l.b16 %v404
        %v420 = vpack.c.b16 %v417, %v416
        %v421 = vpack.c.b16 %v419, %v418
        %vm424 = vcmask 261120
        %v426 = vsel %vm424, %v400, 0
        %428 = vmatprep.subr.bf16.mxu0 0
        %429 = vmatpush1.bf16.msra.mxu0 %v420
        %430 = vmatprep.subr.bf16.mxu0 0
        %431 = vmatpush1.bf16.msra.mxu0 %v421
        %432 = vmatprep.subr.bf16.mxu0 0
        %433 = vmatpush1.bf16.msra.mxu0 0
        %434 = vmatprep.subr.bf16.mxu0 0
        %435 = vmatpush1.bf16.msra.mxu0 0
        %436 = vmatprep.subr.bf16.mxu0 0
        %437 = vmatpush1.bf16.msra.mxu0 0
        %438 = vmatprep.subr.bf16.mxu0 0
        %439 = vmatpush1.bf16.msra.mxu0 0
        %440 = vmatprep.subr.bf16.mxu0 0
        %441 = vmatpush1.bf16.msra.mxu0 0
        %442 = vmatprep.subr.bf16.mxu0 0
        %443 = vmatpush1.bf16.msra.mxu0 0
        %444 = vmatprep.subr.bf16.mxu0 0
        %445 = vmatpush1.bf16.msra.mxu0 0
        %446 = vmatprep.subr.bf16.mxu0 0
        %447 = vmatpush1.bf16.msra.mxu0 0
        %448 = vmatprep.subr.bf16.mxu0 0
        %449 = vmatpush1.bf16.msra.mxu0 0
        %450 = vmatprep.subr.bf16.mxu0 0
        %451 = vmatpush1.bf16.msra.mxu0 0
        %452 = vmatprep.subr.bf16.mxu0 0
        %453 = vmatpush1.bf16.msra.mxu0 0
        %454 = vmatprep.subr.bf16.mxu0 0
        %455 = vmatpush1.bf16.msra.mxu0 0
        %456 = vmatprep.subr.bf16.mxu0 0
        %457 = vmatpush1.bf16.msra.mxu0 0
        %458 = vmatprep.subr.bf16.mxu0 0
        %459 = vmatpush1.bf16.msra.mxu0 0
        %460 = vmatprep.mubr.bf16.mxu0 0
        %461 = vmatmul.mubr.bf16.gmra.mrb[0].mxu0 %v426
        %v462 = vpop.f32.mrb[0].mxu0
        %v463 = vadd.f32 %v410, %v462
        %v464 = vpop.f32.mrb[0].mxu0
        %v465 = vpop.f32.mrb[0].mxu0
        %v466 = vadd.f32 %v410, %v465
        %v467 = vpop.f32.mrb[0].mxu0
        %468 = vdwg.mxu0
        %v469 = vmax.f32 %v463, 0.0
        %v470 = vmax.f32 %v466, 0.0
        %v471 = vpack.c.bf16 %v470, %v469
        %v472 = vld [vmem:[#allocation8] sm:$0xf]
        %v473 = vld [vmem:[#allocation8 + $0x4] sm:$0xf]
        %v474 = vld [vmem:[#allocation8 + $0x8] sm:$0xf]
        %v475 = vld [vmem:[#allocation8 + $0xc] sm:$0xf]
        %v476 = vld [vmem:[#allocation8 + $0x10] sm:$0xf]
        %v477 = vld [vmem:[#allocation8 + $0x14] sm:$0xf]
        %v478 = vld [vmem:[#allocation8 + $0x18] sm:$0xf]
        %v479 = vld [vmem:[#allocation8 + $0x1c] sm:$0xf]
        %v480 = vld [vmem:[#allocation8 + $0x20] sm:$0xf]
        %v481 = vld [vmem:[#allocation8 + $0x24] sm:$0xf]
        %v482 = vld [vmem:[#allocation8 + $0x28] sm:$0xf]
        %v483 = vld [vmem:[#allocation8 + $0x2c] sm:$0xf]
        %v484 = vld [vmem:[#allocation8 + $0x30] sm:$0xf]
        %v485 = vld [vmem:[#allocation8 + $0x34] sm:$0xf]
        %v486 = vld [vmem:[#allocation8 + $0x38] sm:$0xf]
        %v487 = vld [vmem:[#allocation8 + $0x3c] sm:$0xf]
        %v504 = vunpack.c.l.b16 %v472
        %v505 = vunpack.c.l.b16 %v473
        %v506 = vunpack.c.l.b16 %v474
        %v507 = vunpack.c.l.b16 %v475
        %v508 = vunpack.c.l.b16 %v476
        %v509 = vunpack.c.l.b16 %v477
        %v510 = vunpack.c.l.b16 %v478
        %v511 = vunpack.c.l.b16 %v479
        %v512 = vunpack.c.l.b16 %v480
        %v513 = vunpack.c.l.b16 %v481
        %v514 = vunpack.c.l.b16 %v482
        %v515 = vunpack.c.l.b16 %v483
        %v516 = vunpack.c.l.b16 %v484
        %v517 = vunpack.c.l.b16 %v485
        %v518 = vunpack.c.l.b16 %v486
        %v519 = vunpack.c.l.b16 %v487
        %v520 = vpack.c.b16 %v505, %v504
        %v521 = vpack.c.b16 %v507, %v506
        %v522 = vpack.c.b16 %v509, %v508
        %v523 = vpack.c.b16 %v511, %v510
        %v524 = vpack.c.b16 %v513, %v512
        %v525 = vpack.c.b16 %v515, %v514
        %v526 = vpack.c.b16 %v517, %v516
        %v527 = vpack.c.b16 %v519, %v518
        %536 = vmatprep.subr.bf16.mxu0 0
        %537 = vmatpush1.bf16.msra.mxu0 %v520
        %538 = vmatprep.subr.bf16.mxu0 0
        %539 = vmatpush1.bf16.msra.mxu0 %v521
        %540 = vmatprep.subr.bf16.mxu0 0
        %541 = vmatpush1.bf16.msra.mxu0 %v522
        %542 = vmatprep.subr.bf16.mxu0 0
        %543 = vmatpush1.bf16.msra.mxu0 %v523
        %544 = vmatprep.subr.bf16.mxu0 0
        %545 = vmatpush1.bf16.msra.mxu0 %v524
        %546 = vmatprep.subr.bf16.mxu0 0
        %547 = vmatpush1.bf16.msra.mxu0 %v525
        %548 = vmatprep.subr.bf16.mxu0 0
        %549 = vmatpush1.bf16.msra.mxu0 %v526
        %550 = vmatprep.subr.bf16.mxu0 0
        %551 = vmatpush1.bf16.msra.mxu0 %v527
        %552 = vmatprep.subr.bf16.mxu0 0
        %553 = vmatpush1.bf16.msra.mxu0 0
        %554 = vmatprep.subr.bf16.mxu0 0
        %555 = vmatpush1.bf16.msra.mxu0 0
        %556 = vmatprep.subr.bf16.mxu0 0
        %557 = vmatpush1.bf16.msra.mxu0 0
        %558 = vmatprep.subr.bf16.mxu0 0
        %559 = vmatpush1.bf16.msra.mxu0 0
        %560 = vmatprep.subr.bf16.mxu0 0
        %561 = vmatpush1.bf16.msra.mxu0 0
        %562 = vmatprep.subr.bf16.mxu0 0
        %563 = vmatpush1.bf16.msra.mxu0 0
        %564 = vmatprep.subr.bf16.mxu0 0
        %565 = vmatpush1.bf16.msra.mxu0 0
        %566 = vmatprep.subr.bf16.mxu0 0
        %567 = vmatpush1.bf16.msra.mxu0 0
        %568 = vmatprep.mubr.bf16.mxu0 0
        %569 = vmatmul.mubr.bf16.gmra.mrb[0].mxu0 %v471
        %v570 = vpop.f32.mrb[0].mxu0
        %v571 = vadd.f32 0.0, %v570
        %v572 = vpop.f32.mrb[0].mxu0
        %v573 = vpop.f32.mrb[0].mxu0
        %v574 = vadd.f32 0.0, %v573
        %v575 = vpop.f32.mrb[0].mxu0
        %576 = vdwg.mxu0
        %v577 = vpack.c.bf16 %v574, %v571
        %v578 = vld [vmem:[%s5] sm:$0x1]
        %v580 = vlaneseq
        %v581 = vshrl.u32 %v580, 7
        %v582 = vsub.s32 0, %v581
        %v583 = vrot.slane %v578, %v582
        %585 = vmatprep.subr.bf16.mxu0 0
        %586 = vmatpush1.bf16.msra.mxu0 %v577
        %587 = vmatprep.subr.bf16.mxu0 0
        %588 = vmatpush1.bf16.msra.mxu0 0
        %589 = vmatprep.subr.bf16.mxu0 0
        %590 = vmatpush1.bf16.msra.mxu0 0
        %591 = vmatprep.subr.bf16.mxu0 0
        %592 = vmatpush1.bf16.msra.mxu0 0
        %593 = vmatprep.subr.bf16.mxu0 0
        %594 = vmatpush1.bf16.msra.mxu0 0
        %595 = vmatprep.subr.bf16.mxu0 0
        %596 = vmatpush1.bf16.msra.mxu0 0
        %597 = vmatprep.subr.bf16.mxu0 0
        %598 = vmatpush1.bf16.msra.mxu0 0
        %599 = vmatprep.subr.bf16.mxu0 0
        %600 = vmatpush1.bf16.msra.mxu0 0
        %601 = vmatprep.subr.bf16.mxu0 0
        %602 = vmatpush1.bf16.msra.mxu0 0
        %603 = vmatprep.subr.bf16.mxu0 0
        %604 = vmatpush1.bf16.msra.mxu0 0
        %605 = vmatprep.subr.bf16.mxu0 0
        %606 = vmatpush1.bf16.msra.mxu0 0
        %607 = vmatprep.subr.bf16.mxu0 0
        %608 = vmatpush1.bf16.msra.mxu0 0
        %609 = vmatprep.subr.bf16.mxu0 0
        %610 = vmatpush1.bf16.msra.mxu0 0
        %611 = vmatprep.subr.bf16.mxu0 0
        %612 = vmatpush1.bf16.msra.mxu0 0
        %613 = vmatprep.subr.bf16.mxu0 0
        %614 = vmatpush1.bf16.msra.mxu0 0
        %615 = vmatprep.subr.bf16.mxu0 0
        %616 = vmatpush1.bf16.msra.mxu0 0
        %617 = vmatprep.mubr.bf16.mxu0 0
        %618 = vmatmul.mubr.bf16.gmra.mrb[0].mxu0 %v357
        %v619 = vpop.f32.mrb[0].mxu0
        %v620 = vadd.f32 %v583, %v619
        %v621 = vpop.f32.mrb[0].mxu0
        %v622 = vpop.f32.mrb[0].mxu0
        %v623 = vadd.f32 %v583, %v622
        %v624 = vpop.f32.mrb[0].mxu0
        %625 = vdwg.mxu0
        %626 = vst [vmem:[%s338] sm:$0xff] %v620
        %627 = vst [vmem:[%s338 + $0x8] sm:$0xff] %v623
        %s628 = sand.u32 %s171, 1
        %s629 = scalar_lea.sflag [#allocation4], %s628
        %s630 = sand.u32 %s171, 1
        %s631 = smul.addr %s630, 16
        %s632 = scalar_lea.vmem [#allocation10], %s631
        // Predicated region
        $region61: #{tpu_custom_call.1} parent=43 // pred_check
          %p633 = pneg %p181
        $region62: #{tpu_custom_call.1} parent=43 // pred_check_branch
          %635 = sbr.rel (%p633) target = $region64
        $region63: #{tpu_custom_call.1} parent=43 // pred_region
          %s637 = ssub.s32 256, 256
          %638 = vsyncadd %s629, %s637
          %s639 = smul.addr %s27, 2
          %s640 = smul.addr %s639, 128
          %s641 = scalar_lea.hbm %s6, %s640
          %s642 = sshll.u32 %s632, 4
          %s643 = int_to_ptr.vmem [resolvable:$true] %s642
          %648 = dma.vmem_to_hbm [thread:$0]  %s643, 256, %s641, %s629, 128, 128, 8
        $region64: #{tpu_custom_call.1} parent=43 // pred_fallthru
          _
      $region44: #{tpu_custom_call.1} parent=5 // pred_fallthru
        _
      %p649 = scmp.le.s32.totalorder 2, %s22
      // Predicated region
      $region65: #{tpu_custom_call.1} parent=5 // pred_check
        %p650 = pneg %p649
      $region66: #{tpu_custom_call.1} parent=5 // pred_check_branch
        %652 = sbr.rel (%p650) target = $region68
      $region67: #{tpu_custom_call.1} parent=5 // pred_region
        %s653 = ssub.s32 %s22, 2
        // Predicated region
        $region69: #{tpu_custom_call.1} parent=67 // pred_check
          %p654 = pneg %p187
        $region70: #{tpu_custom_call.1} parent=67 // pred_check_branch
          %656 = sbr.rel (%p654) target = $region72
        $region71: #{tpu_custom_call.1} parent=67 // pred_region
          %s657 = sand.u32 %s172, 1
          %s658 = scalar_lea.sflag [#allocation4], %s657
          %s659 = sand.u32 %s172, 1
          %s660 = smul.addr %s659, 16
          %s661 = scalar_lea.vmem [#allocation10], %s660
          %662 = dma.done %s658, 256
        $region72: #{tpu_custom_call.1} parent=67 // pred_fallthru
          _
      $region68: #{tpu_custom_call.1} parent=5 // pred_fallthru
        _
    $region6: #{tpu_custom_call.1} parent=1 // loop_footer
      %s26 = sadd.s32 1, %s22
    $region7: #{tpu_custom_call.1} parent=1 // loop_footer_branch
      %21 = sbr.rel target = $region3
    $region8: #{tpu_custom_call.1} parent=1 // loop_exit
      _
    %663 = vsyncpa [#allocation3], 1
    %s664 = scalar_lea.sflag [#allocation3], 1
    %665 = vsyncpa %s664, 1
    %666 = vsyncpa [#allocation6], 1
    %s667 = scalar_lea.sflag [#allocation6], 1
    %668 = vsyncpa %s667, 1
    %669 = vsyncpa [#allocation9], 1
    %670 = vsyncpa [#allocation4], 1
    %s671 = scalar_lea.sflag [#allocation4], 1
    %672 = vsyncpa %s671, 1

</llo_original>
